<compile_context>
chip_gen: v7x
topology: tpu7x:2x2x1
jax: 0.10.0
libtpu: 0.0.40
codegen_flags: <defaults>
</compile_context>

<pallas_src>
import jax
import jax.numpy as jnp
from jax.experimental import pallas as pl
from jax.experimental.pallas import tpu as pltpu


_LANE = 1024                   # lane width: large multiple of 128
_TARGET_BLOCK_BYTES = 2 << 20  # ~2 MiB per block; 4x (in+out, double-buffered)
                               # stays well under the v5e 16 MiB scoped VMEM


def _flatten_copy_kernel(x_ref, o_ref):
    # Pure pass-through of the current (row_block, _LANE) tile.
    o_ref[...] = x_ref[...]


def flatten_pallas(x):
    """Pallas equivalent of torch `x.view(x.size(0), -1)` for any input shape."""
    n = x.shape[0]
    feat = 1
    for d in x.shape[1:]:
        feat *= d
    total = n * feat

    itemsize = jnp.dtype(x.dtype).itemsize
    # Sublane multiple per dtype packing: 8 (f32) / 16 (bf16) / 32 (int8).
    sub = max(8, 32 // itemsize)

    # ---- re-layout the copy as a lane-dense (rows, _LANE) slab -------------
    rows_needed = pl.cdiv(total, _LANE)

    # Block rows: ~_TARGET_BLOCK_BYTES per block, a multiple of `sub`, but no
    # larger than the (rounded-up) number of rows the data actually needs.
    row_block_cap = max(sub, (_TARGET_BLOCK_BYTES // (_LANE * itemsize)) // sub * sub)
    row_block = min(row_block_cap, pl.cdiv(rows_needed, sub) * sub)

    rows = pl.cdiv(rows_needed, row_block) * row_block   # whole blocks only
    padded_total = rows * _LANE

    flat = jnp.reshape(x, (total,))                      # metadata-only
    if padded_total != total:
        flat = jnp.pad(flat, (0, padded_total - total))
    slab = jnp.reshape(flat, (rows, _LANE))

    grid = (rows // row_block,)

    out_slab = pl.pallas_call(
        _flatten_copy_kernel,
        out_shape=jax.ShapeDtypeStruct((rows, _LANE), x.dtype),
        grid_spec=pltpu.PrefetchScalarGridSpec(
            num_scalar_prefetch=0,
            grid=grid,
            in_specs=[pl.BlockSpec((row_block, _LANE), lambda i: (i, 0))],
            out_specs=pl.BlockSpec((row_block, _LANE), lambda i: (i, 0)),
        ),
        compiler_params=pltpu.CompilerParams(
            dimension_semantics=("parallel",),
        ),
    )(slab)

    out_flat = jnp.reshape(out_slab, (padded_total,))
    if padded_total != total:
        out_flat = out_flat[:total]
    return jnp.reshape(out_flat, (n, feat))


if __name__ == "__main__":
    key = jax.random.PRNGKey(0)

    # NCHW conv feature map: batch=2, channels=4, 16x16 spatial.
    x = jax.random.normal(key, (2, 4, 16, 16), dtype=jnp.float32)
    y = flatten_pallas(x)
    jax.block_until_ready(y)
    y_ref = jnp.reshape(x, (x.shape[0], -1))
    assert y.shape == (2, 4 * 16 * 16), y.shape
    assert y.dtype == x.dtype
    assert bool(jnp.array_equal(y, y_ref))

    # Irregular (non-128-multiple) feature size exercises the padding path.
    x2 = jax.random.normal(jax.random.PRNGKey(1), (2, 3, 5, 7), dtype=jnp.float32)
    y2 = flatten_pallas(x2)
    jax.block_until_ready(y2)
    assert bool(jnp.array_equal(y2, jnp.reshape(x2, (2, -1))))

    print("KERNEL_OK")
</pallas_src>

<mosaic_0001>
module attributes {stable_mosaic.version = 11 : i64} {
  func.func @_flatten_copy_kernel(%arg0: i32, %arg1: memref<8x1024xf32, #tpu.memory_space<vmem>>, %arg2: memref<8x1024xf32, #tpu.memory_space<vmem>>) attributes {dimension_semantics = [#tpu.dimension_semantics<parallel>], iteration_bounds = array<i64: 1>, scalar_prefetch = 0 : i64, scratch_operands = 0 : i64, tpu.core_type = #tpu.core_type<tc>, window_params = [{transform_indices = @transform_0, window_bounds = array<i64: 8, 1024>}, {transform_indices = @transform_1, window_bounds = array<i64: 8, 1024>}]} {
    %c0 = arith.constant 0 : index
    %c0_0 = arith.constant 0 : index
    %0 = vector.load %arg1[%c0, %c0_0] : memref<8x1024xf32, #tpu.memory_space<vmem>>, vector<8x1024xf32>
    %c0_1 = arith.constant 0 : index
    %c0_2 = arith.constant 0 : index
    %1 = vector.load %arg2[%c0_1, %c0_2] : memref<8x1024xf32, #tpu.memory_space<vmem>>, vector<8x1024xf32>
    tpu.vector_store %arg2[%c0_1, %c0_2], %0 {strides = array<i32>} : memref<8x1024xf32, #tpu.memory_space<vmem>>, vector<8x1024xf32>,
    return
  }
  func.func @transform_0(%arg0: i32) -> (i32, i32) {
    %c0_i32 = arith.constant 0 : i32
    %c0_i32_0 = arith.constant 0 : i32
    return %arg0, %c0_i32 : i32, i32
  }
  func.func @transform_1(%arg0: i32) -> (i32, i32) {
    %c0_i32 = arith.constant 0 : i32
    %c0_i32_0 = arith.constant 0 : i32
    return %arg0, %c0_i32 : i32, i32
  }
}

</mosaic_0001>

<llo_original>
// kernel: tpu_custom_call.1
$region0: #{tpu_custom_call.1}
  #allocation0 [shape = 'u32[]', space=smem, size = 0x4, offset = 0x4, fixed_abs, tag = 'smem constant byte address 0x4 - core index']
  #allocation1 [shape = 'u32[144,128]{1,0:T(1,128)}', space=vmem, size = 0x12000, scoped, tag = 'internal scratch']
  %s0 = inlined_call_operand.hbm [shape: f32[8,1024], index: 0, kind: input, shape index: {}]
  %s1 = inlined_call_operand.hbm [shape: f32[8,1024], index: 1, kind: output, shape index: {}]
  %s2 = sld [smem:[#allocation0]]
  $region18: #{tpu_custom_call.1} parent=0
    _
  %s4 = ssub.s32 1, %s2
  %s5 = scalar_select 0, %s4, %s2
  $region1: #{tpu_custom_call.1} parent=0
    #allocation2 [shape = 'u8[32768]{0}', space=vmem, size = 0x8000, scoped, tag = 'input window, operand 0, single buffered']
    #allocation3 [shape = 's32[1]{0}', space=sflag, size = 0x4, scoped, tag = 'scoped memory for tpu_custom_call.1']
    #allocation4 [shape = 's32[1]{0}', space=sflag, size = 0x4, scoped, tag = 'scoped memory for tpu_custom_call.1']
    #allocation5 [shape = 'u8[32768]{0}', space=vmem, size = 0x8000, scoped, tag = 'output window, operand 0, single buffered']
    %6 = vsyncpa [#allocation3], 0
    %7 = vsyncpa [#allocation4], 0
    // Predicated region
    $region2: #{tpu_custom_call.1} parent=1 // pred_check
      _
    $region3: #{tpu_custom_call.1} parent=1 // pred_check_branch
      %9 = sbr.rel (0) target = $region5
    $region4: #{tpu_custom_call.1} parent=1 // pred_region
      %s11 = ssub.s32 1024, 1024
      %12 = vsyncadd [#allocation3], %s11
      %s14 = sshll.u32 [#allocation2], 4
      %s15 = int_to_ptr.vmem [resolvable:$true] %s14
      %17 = dma.hbm_to_vmem [thread:$0]  %s0, 1024, %s15, [#allocation3]
    $region5: #{tpu_custom_call.1} parent=1 // pred_fallthru
      _
    // Predicated region
    $region6: #{tpu_custom_call.1} parent=1 // pred_check
      _
    $region7: #{tpu_custom_call.1} parent=1 // pred_check_branch
      %19 = sbr.rel (0) target = $region9
    $region8: #{tpu_custom_call.1} parent=1 // pred_region
      %20 = dma.done [#allocation3], 1024
    $region9: #{tpu_custom_call.1} parent=1 // pred_fallthru
      _
    %v21 = vld [vmem:[#allocation2] sm:$0xff]
    %v22 = vld [vmem:[#allocation2 + $0x8] sm:$0xff]
    %v23 = vld [vmem:[#allocation2 + $0x10] sm:$0xff]
    %v24 = vld [vmem:[#allocation2 + $0x18] sm:$0xff]
    %v25 = vld [vmem:[#allocation2 + $0x20] sm:$0xff]
    %v26 = vld [vmem:[#allocation2 + $0x28] sm:$0xff]
    %v27 = vld [vmem:[#allocation2 + $0x30] sm:$0xff]
    %v28 = vld [vmem:[#allocation2 + $0x38] sm:$0xff]
    %29 = vst [vmem:[#allocation5] sm:$0xff] %v21
    %30 = vst [vmem:[#allocation5 + $0x8] sm:$0xff] %v22
    %31 = vst [vmem:[#allocation5 + $0x10] sm:$0xff] %v23
    %32 = vst [vmem:[#allocation5 + $0x18] sm:$0xff] %v24
    %33 = vst [vmem:[#allocation5 + $0x20] sm:$0xff] %v25
    %34 = vst [vmem:[#allocation5 + $0x28] sm:$0xff] %v26
    %35 = vst [vmem:[#allocation5 + $0x30] sm:$0xff] %v27
    %36 = vst [vmem:[#allocation5 + $0x38] sm:$0xff] %v28
    // Predicated region
    $region10: #{tpu_custom_call.1} parent=1 // pred_check
      _
    $region11: #{tpu_custom_call.1} parent=1 // pred_check_branch
      %38 = sbr.rel (0) target = $region13
    $region12: #{tpu_custom_call.1} parent=1 // pred_region
      %s40 = ssub.s32 1024, 1024
      %41 = vsyncadd [#allocation4], %s40
      %s43 = sshll.u32 [#allocation5], 4
      %s44 = int_to_ptr.vmem [resolvable:$true] %s43
      %46 = dma.vmem_to_hbm [thread:$0]  %s44, 1024, %s1, [#allocation4]
    $region13: #{tpu_custom_call.1} parent=1 // pred_fallthru
      _
    // Predicated region
    $region14: #{tpu_custom_call.1} parent=1 // pred_check
      _
    $region15: #{tpu_custom_call.1} parent=1 // pred_check_branch
      %48 = sbr.rel (0) target = $region17
    $region16: #{tpu_custom_call.1} parent=1 // pred_region
      %49 = dma.done [#allocation4], 1024
    $region17: #{tpu_custom_call.1} parent=1 // pred_fallthru
      _
    %50 = vsyncpa [#allocation3], 1
    %51 = vsyncpa [#allocation4], 1

</llo_original>
